<compile_context>
chip_gen: v7x
topology: tpu7x:2x2x1
jax: 0.10.0
libtpu: 0.0.40
codegen_flags: <defaults>
</compile_context>

<pallas_src>
import jax
import jax.numpy as jnp
from jax import lax
from jax.experimental import pallas as pl
from jax.experimental.pallas import tpu as pltpu


# dot_general dimension numbers for 2-D operands.
_NT = (((1,), (1,)), ((), ()))   # contract last of both:  (m,k)·(n,k) -> (m,n)  == A @ B.T
_TN = (((0,), (0,)), ((), ()))   # contract first of both: (k,m)·(k,n) -> (m,n)  == A.T @ B


def _elu(x):
    # F.elu(alpha=1): x if x > 0 else exp(x) - 1.  (exp-1 instead of expm1: identical to
    # ~1e-7 on the relevant range and exp is guaranteed to lower to the EUP.)
    return jnp.where(x > 0, x, jnp.exp(jnp.minimum(x, 0.0)) - 1.0)


def _uniform01(seed, tile_idx, shape):
    """Stateless counter-based U[0,1) noise (torch.rand_like semantics).

    lowbias32-style integer hash of the global element index, using only plain jnp int ops
    so it works under Mosaic AND interpret mode (pltpu.prng_* has no CPU lowering).
    """
    rows = lax.broadcasted_iota(jnp.int32, shape, 0)
    cols = lax.broadcasted_iota(jnp.int32, shape, 1)
    x = rows * jnp.int32(shape[1]) + cols + tile_idx * jnp.int32(shape[0] * shape[1])
    x = x + seed * jnp.int32(-1640531527)            # seed * 0x9E3779B9 (wrapping mul)
    x = (x ^ (x >> 16)) * jnp.int32(2146121005)      # 0x7FEB352D
    x = (x ^ (x >> 15)) * jnp.int32(-2073254261)     # 0x846CA68B
    x = x ^ (x >> 16)
    mant = x & jnp.int32(0x007FFFFF)                 # 23 well-mixed, non-negative bits
    return mant.astype(jnp.float32) * jnp.float32(1.0 / (1 << 23))


def _vae_compute(x, w1, w21, w22, w3, w21t, w22t, w4t, eps_t):
    """One batch tile.

    x:     (TILE_B, 8) input rows (batch in sublanes, as DMA'd from HBM)
    w*:    PyTorch-layout (out, in) weights; w*t are their (in, out) transposes
    eps_t: (4, TILE_B) U[0,1) noise, batch in lanes
    Returns batch-major recon (TILE_B, 8), mu (TILE_B, 4), logvar (TILE_B, 4).
    """
    # h1.T = W1 @ x.T -- the input transpose is folded into the NT matmul; everything
    # downstream is lane-dense (feature-major), so ELU / exp run on full-width vregs.
    h1_t = _elu(lax.dot_general(w1, x, _NT, preferred_element_type=jnp.float32))    # (6, TB)
    mu_t = jnp.dot(w21, h1_t, preferred_element_type=jnp.float32)                   # (4, TB)
    logvar_t = jnp.dot(w22, h1_t, preferred_element_type=jnp.float32)               # (4, TB)
    # reparameterize: z = mu + eps * exp(0.5*logvar),  eps ~ U[0,1) (torch.rand_like)
    z_t = mu_t + eps_t * jnp.exp(0.5 * logvar_t)                                    # (4, TB)
    h3_t = _elu(jnp.dot(w3, z_t, preferred_element_type=jnp.float32))               # (6, TB)
    # Batch-major outputs straight off the MXU (TN matmuls with pre-transposed tiny
    # weights) -> no in-kernel or wrapper-side transposes at all.
    recon = lax.dot_general(h3_t, w4t, _TN, preferred_element_type=jnp.float32)     # (TB, 8)
    mu = lax.dot_general(h1_t, w21t, _TN, preferred_element_type=jnp.float32)       # (TB, 4)
    logvar = lax.dot_general(h1_t, w22t, _TN, preferred_element_type=jnp.float32)   # (TB, 4)
    return recon, mu, logvar


def _vae_kernel_rng(seed_ref, x_ref, w1_ref, w21_ref, w22_ref, w3_ref,
                    w21t_ref, w22t_ref, w4t_ref, recon_ref, mu_ref, logvar_ref):
    tile_b = x_ref.shape[0]
    eps_t = _uniform01(seed_ref[0], pl.program_id(0), (4, tile_b))
    recon, mu, logvar = _vae_compute(
        x_ref[...], w1_ref[...], w21_ref[...], w22_ref[...], w3_ref[...],
        w21t_ref[...], w22t_ref[...], w4t_ref[...], eps_t)
    recon_ref[...] = recon
    mu_ref[...] = mu
    logvar_ref[...] = logvar


def _vae_kernel_eps(x_ref, w1_ref, w21_ref, w22_ref, w3_ref,
                    w21t_ref, w22t_ref, w4t_ref, eps_ref,
                    recon_ref, mu_ref, logvar_ref):
    recon, mu, logvar = _vae_compute(
        x_ref[...], w1_ref[...], w21_ref[...], w22_ref[...], w3_ref[...],
        w21t_ref[...], w22t_ref[...], w4t_ref[...], eps_ref[...])
    recon_ref[...] = recon
    mu_ref[...] = mu
    logvar_ref[...] = logvar


def _round_up(n, m):
    return ((n + m - 1) // m) * m


def _choose_tile_b(B, tile_b_max):
    """Batch tile: big enough to amortize per-step overhead, padded waste bounded,
    even number of tiles when the batch is split (v7x megacore balance)."""
    tile_b_max = max(128, _round_up(int(tile_b_max), 128))
    if B <= tile_b_max:
        return _round_up(max(B, 1), 128)
    n_tiles = -(-B // tile_b_max)
    if n_tiles % 2:
        n_tiles += 1
    return max(128, _round_up(-(-B // n_tiles), 128))


def _vmem_limit_bytes(tile_b, with_eps):
    """Double-buffered VMEM footprint; (tile_b, 8/4) f32 blocks lane-pad to 128 lanes."""
    lane_padded_row = 128 * 4
    x_bytes = tile_b * lane_padded_row            # (tile_b, 8) input block
    out_bytes = 3 * tile_b * lane_padded_row      # recon / mu / logvar blocks
    eps_bytes = (8 * tile_b * 4) if with_eps else 0
    weights = 8 * 8 * 128 * 4                     # tiny VMEM-resident weights (padded)
    need = 2 * (x_bytes + out_bytes + eps_bytes) + weights
    return int(max(32 << 20, min(need + (8 << 20), 64 << 20)))


def vae_forward(x, params, *, eps=None, seed=0, tile_b_max=8192):
    """VAE.forward.  x: (B, 8) -> (recon (B, 8), mu (B, 4), logvar (B, 4)).

    eps=None   -> U[0,1) noise generated in-kernel (torch.rand_like semantics; default).
    eps=(B,4)  -> use the supplied noise (bit-exact path, for testing).
    """
    B = x.shape[0]
    tile_b = _choose_tile_b(B, tile_b_max)
    b_pad = _round_up(B, tile_b)
    n_tiles = b_pad // tile_b

    x = x.astype(jnp.float32)
    x_pad = x if b_pad == B else jnp.zeros((b_pad, 8), jnp.float32).at[:B].set(x)

    # PyTorch (out, in) layout drives the feature-major matmuls; the pre-transposed copies
    # (24-48 floats each, built host-side) drive the batch-major TN output matmuls.
    w1 = params["w1"].astype(jnp.float32)        # (6, 8)
    w21 = params["w21"].astype(jnp.float32)      # (4, 6)
    w22 = params["w22"].astype(jnp.float32)      # (4, 6)
    w3 = params["w3"].astype(jnp.float32)        # (6, 4)
    w4 = params["w4"].astype(jnp.float32)        # (8, 6)
    w21t, w22t, w4t = w21.T, w22.T, w4.T         # (6,4), (6,4), (6,8)

    x_spec = pl.BlockSpec((tile_b, 8), lambda i, *_: (i, 0))
    w_spec = lambda s: pl.BlockSpec(s, lambda i, *_: (0, 0))          # VMEM-resident
    weight_specs = [w_spec((6, 8)), w_spec((4, 6)), w_spec((4, 6)), w_spec((6, 4)),
                    w_spec((6, 4)), w_spec((6, 4)), w_spec((6, 8))]
    weight_args = (w1, w21, w22, w3, w21t, w22t, w4t)

    out_specs = [pl.BlockSpec((tile_b, 8), lambda i, *_: (i, 0)),
                 pl.BlockSpec((tile_b, 4), lambda i, *_: (i, 0)),
                 pl.BlockSpec((tile_b, 4), lambda i, *_: (i, 0))]
    out_shape = (jax.ShapeDtypeStruct((b_pad, 8), jnp.float32),
                 jax.ShapeDtypeStruct((b_pad, 4), jnp.float32),
                 jax.ShapeDtypeStruct((b_pad, 4), jnp.float32))

    compiler_params = pltpu.CompilerParams(
        dimension_semantics=("parallel",),        # batch tiles split across TCs on v7x
        vmem_limit_bytes=_vmem_limit_bytes(tile_b, with_eps=eps is not None))
    cost = pl.CostEstimate(
        flops=432 * b_pad,
        transcendentals=16 * b_pad,
        bytes_accessed=(112 if eps is not None else 96) * b_pad)

    if eps is None:
        grid_spec = pltpu.PrefetchScalarGridSpec(
            num_scalar_prefetch=1, grid=(n_tiles,),
            in_specs=[x_spec] + weight_specs, out_specs=out_specs)
        seed_arr = jnp.asarray([seed], dtype=jnp.int32)
        recon, mu, logvar = pl.pallas_call(
            _vae_kernel_rng, out_shape=out_shape, grid_spec=grid_spec,
            compiler_params=compiler_params, cost_estimate=cost,
        )(seed_arr, x_pad, *weight_args)
    else:
        eps = eps.astype(jnp.float32)
        eps_t = (eps.T if b_pad == B
                 else jnp.zeros((4, b_pad), jnp.float32).at[:, :B].set(eps.T))
        eps_spec = pl.BlockSpec((4, tile_b), lambda i, *_: (0, i))    # lane-dense noise
        grid_spec = pltpu.PrefetchScalarGridSpec(
            num_scalar_prefetch=0, grid=(n_tiles,),
            in_specs=[x_spec] + weight_specs + [eps_spec], out_specs=out_specs)
        recon, mu, logvar = pl.pallas_call(
            _vae_kernel_eps, out_shape=out_shape, grid_spec=grid_spec,
            compiler_params=compiler_params, cost_estimate=cost,
        )(x_pad, *weight_args, eps_t)

    if b_pad != B:
        recon, mu, logvar = recon[:B], mu[:B], logvar[:B]
    return recon, mu, logvar


def init_params(key):
    """PyTorch nn.Linear(in, out, bias=False) layout: weight shape (out, in)."""
    k1, k2, k3, k4, k5 = jax.random.split(key, 5)

    def lin(k, out_f, in_f):
        bound = 1.0 / jnp.sqrt(jnp.float32(in_f))
        return jax.random.uniform(k, (out_f, in_f), jnp.float32, -bound, bound)

    return {
        "w1":  lin(k1, 6, 8),   # fc1
        "w21": lin(k2, 4, 6),   # fc21
        "w22": lin(k3, 4, 6),   # fc22
        "w3":  lin(k4, 6, 4),   # fc3
        "w4":  lin(k5, 8, 6),   # fc4
    }


if __name__ == "__main__":
    key = jax.random.PRNGKey(0)
    kp, kx, ke = jax.random.split(key, 3)

    B = 2
    params = init_params(kp)
    x = jax.random.normal(kx, (B, 8), jnp.float32)

    # Pure-JAX reference of the same math (PyTorch forward semantics).
    def ref_forward(x, params, eps):
        h1 = x @ params["w1"].T
        h1 = jnp.where(h1 > 0, h1, jnp.expm1(jnp.minimum(h1, 0.0)))
        mu = h1 @ params["w21"].T
        logvar = h1 @ params["w22"].T
        z = mu + eps * jnp.exp(0.5 * logvar)
        h3 = z @ params["w3"].T
        h3 = jnp.where(h3 > 0, h3, jnp.expm1(jnp.minimum(h3, 0.0)))
        return h3 @ params["w4"].T, mu, logvar

    # Tolerance covers possible bf16-pass differences between the MXU matmuls in the
    # kernel and XLA's default-precision reference matmuls on TPU.
    TOL = 1e-2

    # 1) Explicit-eps path: supply eps ~ U[0,1) (torch.rand_like) and compare exactly.
    eps = jax.random.uniform(ke, (B, 4), jnp.float32)
    recon, mu, logvar = vae_forward(x, params, eps=eps)
    jax.block_until_ready((recon, mu, logvar))
    r_ref, mu_ref, lv_ref = ref_forward(x, params, eps)
    assert recon.shape == (B, 8) and mu.shape == (B, 4) and logvar.shape == (B, 4)
    assert jnp.allclose(recon, r_ref, atol=TOL, rtol=TOL)
    assert jnp.allclose(mu, mu_ref, atol=TOL, rtol=TOL)
    assert jnp.allclose(logvar, lv_ref, atol=TOL, rtol=TOL)

    # 2) Default production path: eps generated in-kernel (same U[0,1) distribution).
    #    mu / logvar are eps-independent and must still match.
    recon2, mu2, logvar2 = vae_forward(x, params, seed=42)
    jax.block_until_ready((recon2, mu2, logvar2))
    assert recon2.shape == (B, 8)
    assert jnp.allclose(mu2, mu_ref, atol=TOL, rtol=TOL)
    assert jnp.allclose(logvar2, lv_ref, atol=TOL, rtol=TOL)
    assert bool(jnp.all(jnp.isfinite(recon2)))

    print("KERNEL_OK")
</pallas_src>

<mosaic_0001>
module attributes {stable_mosaic.version = 11 : i64} {
  func.func @_vae_kernel_eps(%arg0: i32, %arg1: memref<128x8xf32, #tpu.memory_space<vmem>>, %arg2: memref<6x8xf32, #tpu.memory_space<vmem>>, %arg3: memref<4x6xf32, #tpu.memory_space<vmem>>, %arg4: memref<4x6xf32, #tpu.memory_space<vmem>>, %arg5: memref<6x4xf32, #tpu.memory_space<vmem>>, %arg6: memref<6x4xf32, #tpu.memory_space<vmem>>, %arg7: memref<6x4xf32, #tpu.memory_space<vmem>>, %arg8: memref<6x8xf32, #tpu.memory_space<vmem>>, %arg9: memref<4x128xf32, #tpu.memory_space<vmem>>, %arg10: memref<128x8xf32, #tpu.memory_space<vmem>>, %arg11: memref<128x4xf32, #tpu.memory_space<vmem>>, %arg12: memref<128x4xf32, #tpu.memory_space<vmem>>) attributes {dimension_semantics = [#tpu.dimension_semantics<parallel>], iteration_bounds = array<i64: 1>, scalar_prefetch = 0 : i64, scratch_operands = 0 : i64, tpu.core_type = #tpu.core_type<tc>, window_params = [{transform_indices = @transform_0, window_bounds = array<i64: 128, 8>}, {pipeline_mode = #tpu.pipeline_mode<synchronous>, transform_indices = @transform_1, window_bounds = array<i64: 6, 8>}, {pipeline_mode = #tpu.pipeline_mode<synchronous>, transform_indices = @transform_2, window_bounds = array<i64: 4, 6>}, {pipeline_mode = #tpu.pipeline_mode<synchronous>, transform_indices = @transform_3, window_bounds = array<i64: 4, 6>}, {pipeline_mode = #tpu.pipeline_mode<synchronous>, transform_indices = @transform_4, window_bounds = array<i64: 6, 4>}, {pipeline_mode = #tpu.pipeline_mode<synchronous>, transform_indices = @transform_5, window_bounds = array<i64: 6, 4>}, {pipeline_mode = #tpu.pipeline_mode<synchronous>, transform_indices = @transform_6, window_bounds = array<i64: 6, 4>}, {pipeline_mode = #tpu.pipeline_mode<synchronous>, transform_indices = @transform_7, window_bounds = array<i64: 6, 8>}, {transform_indices = @transform_8, window_bounds = array<i64: 4, 128>}, {transform_indices = @transform_9, window_bounds = array<i64: 128, 8>}, {transform_indices = @transform_10, window_bounds = array<i64: 128, 4>}, {transform_indices = @transform_11, window_bounds = array<i64: 128, 4>}]} {
    %c0 = arith.constant 0 : index
    %c0_0 = arith.constant 0 : index
    %0 = vector.load %arg1[%c0, %c0_0] : memref<128x8xf32, #tpu.memory_space<vmem>>, vector<128x8xf32>
    %c0_1 = arith.constant 0 : index
    %c0_2 = arith.constant 0 : index
    %1 = vector.load %arg2[%c0_1, %c0_2] : memref<6x8xf32, #tpu.memory_space<vmem>>, vector<6x8xf32>
    %c0_3 = arith.constant 0 : index
    %c0_4 = arith.constant 0 : index
    %2 = vector.load %arg3[%c0_3, %c0_4] : memref<4x6xf32, #tpu.memory_space<vmem>>, vector<4x6xf32>
    %c0_5 = arith.constant 0 : index
    %c0_6 = arith.constant 0 : index
    %3 = vector.load %arg4[%c0_5, %c0_6] : memref<4x6xf32, #tpu.memory_space<vmem>>, vector<4x6xf32>
    %c0_7 = arith.constant 0 : index
    %c0_8 = arith.constant 0 : index
    %4 = vector.load %arg5[%c0_7, %c0_8] : memref<6x4xf32, #tpu.memory_space<vmem>>, vector<6x4xf32>
    %c0_9 = arith.constant 0 : index
    %c0_10 = arith.constant 0 : index
    %5 = vector.load %arg6[%c0_9, %c0_10] : memref<6x4xf32, #tpu.memory_space<vmem>>, vector<6x4xf32>
    %c0_11 = arith.constant 0 : index
    %c0_12 = arith.constant 0 : index
    %6 = vector.load %arg7[%c0_11, %c0_12] : memref<6x4xf32, #tpu.memory_space<vmem>>, vector<6x4xf32>
    %c0_13 = arith.constant 0 : index
    %c0_14 = arith.constant 0 : index
    %7 = vector.load %arg8[%c0_13, %c0_14] : memref<6x8xf32, #tpu.memory_space<vmem>>, vector<6x8xf32>
    %c0_15 = arith.constant 0 : index
    %c0_16 = arith.constant 0 : index
    %8 = vector.load %arg9[%c0_15, %c0_16] : memref<4x128xf32, #tpu.memory_space<vmem>>, vector<4x128xf32>
    %cst = arith.constant dense<0.000000e+00> : vector<6x128xf32>
    %9 = tpu.matmul %1, %0, %cst {dimension_numbers = #tpu.dot_dimension_numbers<[1], [1], [0], [0], [0, 0, 1, 0], [], []>} : vector<6x8xf32>, vector<128x8xf32>, vector<6x128xf32> -> vector<6x128xf32>
    %cst_17 = arith.constant 0.000000e+00 : f32
    %10 = vector.broadcast %cst_17 : f32 to vector<6x128xf32>
    %11 = arith.cmpf ogt, %9, %10 : vector<6x128xf32>
    %cst_18 = arith.constant 0.000000e+00 : f32
    %12 = vector.broadcast %cst_18 : f32 to vector<6x128xf32>
    %13 = arith.minimumf %9, %12 : vector<6x128xf32>
    %14 = math.exp %13 : vector<6x128xf32>
    %cst_19 = arith.constant 1.000000e+00 : f32
    %15 = vector.broadcast %cst_19 : f32 to vector<6x128xf32>
    %16 = arith.subf %14, %15 : vector<6x128xf32>
    %17 = arith.select %11, %9, %16 : vector<6x128xi1>, vector<6x128xf32>
    %cst_20 = arith.constant dense<0.000000e+00> : vector<4x128xf32>
    %18 = tpu.matmul %2, %17, %cst_20 {dimension_numbers = #tpu.dot_dimension_numbers<[1], [0], [0], [1], [0, 0, 1, 1], [], []>} : vector<4x6xf32>, vector<6x128xf32>, vector<4x128xf32> -> vector<4x128xf32>
    %cst_21 = arith.constant dense<0.000000e+00> : vector<4x128xf32>
    %19 = tpu.matmul %3, %17, %cst_21 {dimension_numbers = #tpu.dot_dimension_numbers<[1], [0], [0], [1], [0, 0, 1, 1], [], []>} : vector<4x6xf32>, vector<6x128xf32>, vector<4x128xf32> -> vector<4x128xf32>
    %cst_22 = arith.constant 5.000000e-01 : f32
    %20 = vector.broadcast %cst_22 : f32 to vector<4x128xf32>
    %21 = arith.mulf %20, %19 : vector<4x128xf32>
    %22 = math.exp %21 : vector<4x128xf32>
    %23 = arith.mulf %8, %22 : vector<4x128xf32>
    %24 = arith.addf %18, %23 : vector<4x128xf32>
    %cst_23 = arith.constant dense<0.000000e+00> : vector<6x128xf32>
    %25 = tpu.matmul %4, %24, %cst_23 {dimension_numbers = #tpu.dot_dimension_numbers<[1], [0], [0], [1], [0, 0, 1, 1], [], []>} : vector<6x4xf32>, vector<4x128xf32>, vector<6x128xf32> -> vector<6x128xf32>
    %cst_24 = arith.constant 0.000000e+00 : f32
    %26 = vector.broadcast %cst_24 : f32 to vector<6x128xf32>
    %27 = arith.cmpf ogt, %25, %26 : vector<6x128xf32>
    %cst_25 = arith.constant 0.000000e+00 : f32
    %28 = vector.broadcast %cst_25 : f32 to vector<6x128xf32>
    %29 = arith.minimumf %25, %28 : vector<6x128xf32>
    %30 = math.exp %29 : vector<6x128xf32>
    %cst_26 = arith.constant 1.000000e+00 : f32
    %31 = vector.broadcast %cst_26 : f32 to vector<6x128xf32>
    %32 = arith.subf %30, %31 : vector<6x128xf32>
    %33 = arith.select %27, %25, %32 : vector<6x128xi1>, vector<6x128xf32>
    %cst_27 = arith.constant dense<0.000000e+00> : vector<128x8xf32>
    %34 = tpu.matmul %33, %7, %cst_27 {dimension_numbers = #tpu.dot_dimension_numbers<[0], [0], [1], [1], [0, 1, 1, 1], [], []>} : vector<6x128xf32>, vector<6x8xf32>, vector<128x8xf32> -> vector<128x8xf32>
    %cst_28 = arith.constant dense<0.000000e+00> : vector<128x4xf32>
    %35 = tpu.matmul %17, %5, %cst_28 {dimension_numbers = #tpu.dot_dimension_numbers<[0], [0], [1], [1], [0, 1, 1, 1], [], []>} : vector<6x128xf32>, vector<6x4xf32>, vector<128x4xf32> -> vector<128x4xf32>
    %cst_29 = arith.constant dense<0.000000e+00> : vector<128x4xf32>
    %36 = tpu.matmul %17, %6, %cst_29 {dimension_numbers = #tpu.dot_dimension_numbers<[0], [0], [1], [1], [0, 1, 1, 1], [], []>} : vector<6x128xf32>, vector<6x4xf32>, vector<128x4xf32> -> vector<128x4xf32>
    %c0_30 = arith.constant 0 : index
    %c0_31 = arith.constant 0 : index
    %37 = vector.load %arg10[%c0_30, %c0_31] : memref<128x8xf32, #tpu.memory_space<vmem>>, vector<128x8xf32>
    tpu.vector_store %arg10[%c0_30, %c0_31], %34 {strides = array<i32>} : memref<128x8xf32, #tpu.memory_space<vmem>>, vector<128x8xf32>,
    %c0_32 = arith.constant 0 : index
    %c0_33 = arith.constant 0 : index
    %38 = vector.load %arg11[%c0_32, %c0_33] : memref<128x4xf32, #tpu.memory_space<vmem>>, vector<128x4xf32>
    tpu.vector_store %arg11[%c0_32, %c0_33], %35 {strides = array<i32>} : memref<128x4xf32, #tpu.memory_space<vmem>>, vector<128x4xf32>,
    %c0_34 = arith.constant 0 : index
    %c0_35 = arith.constant 0 : index
    %39 = vector.load %arg12[%c0_34, %c0_35] : memref<128x4xf32, #tpu.memory_space<vmem>>, vector<128x4xf32>
    tpu.vector_store %arg12[%c0_34, %c0_35], %36 {strides = array<i32>} : memref<128x4xf32, #tpu.memory_space<vmem>>, vector<128x4xf32>,
    return
  }
  func.func @transform_0(%arg0: i32) -> (i32, i32) {
    %c0_i32 = arith.constant 0 : i32
    %c0_i32_0 = arith.constant 0 : i32
    return %arg0, %c0_i32 : i32, i32
  }
  func.func @transform_1(%arg0: i32) -> (i32, i32) {
    %c0_i32 = arith.constant 0 : i32
    %c0_i32_0 = arith.constant 0 : i32
    %c0_i32_1 = arith.constant 0 : i32
    return %c0_i32, %c0_i32_0 : i32, i32
  }
  func.func @transform_2(%arg0: i32) -> (i32, i32) {
    %c0_i32 = arith.constant 0 : i32
    %c0_i32_0 = arith.constant 0 : i32
    %c0_i32_1 = arith.constant 0 : i32
    return %c0_i32, %c0_i32_0 : i32, i32
  }
  func.func @transform_3(%arg0: i32) -> (i32, i32) {
    %c0_i32 = arith.constant 0 : i32
    %c0_i32_0 = arith.constant 0 : i32
    %c0_i32_1 = arith.constant 0 : i32
    return %c0_i32, %c0_i32_0 : i32, i32
  }
  func.func @transform_4(%arg0: i32) -> (i32, i32) {
    %c0_i32 = arith.constant 0 : i32
    %c0_i32_0 = arith.constant 0 : i32
    %c0_i32_1 = arith.constant 0 : i32
    return %c0_i32, %c0_i32_0 : i32, i32
  }
  func.func @transform_5(%arg0: i32) -> (i32, i32) {
    %c0_i32 = arith.constant 0 : i32
    %c0_i32_0 = arith.constant 0 : i32
    %c0_i32_1 = arith.constant 0 : i32
    return %c0_i32, %c0_i32_0 : i32, i32
  }
  func.func @transform_6(%arg0: i32) -> (i32, i32) {
    %c0_i32 = arith.constant 0 : i32
    %c0_i32_0 = arith.constant 0 : i32
    %c0_i32_1 = arith.constant 0 : i32
    return %c0_i32, %c0_i32_0 : i32, i32
  }
  func.func @transform_7(%arg0: i32) -> (i32, i32) {
    %c0_i32 = arith.constant 0 : i32
    %c0_i32_0 = arith.constant 0 : i32
    %c0_i32_1 = arith.constant 0 : i32
    return %c0_i32, %c0_i32_0 : i32, i32
  }
  func.func @transform_8(%arg0: i32) -> (i32, i32) {
    %c0_i32 = arith.constant 0 : i32
    %c0_i32_0 = arith.constant 0 : i32
    return %c0_i32, %arg0 : i32, i32
  }
  func.func @transform_9(%arg0: i32) -> (i32, i32) {
    %c0_i32 = arith.constant 0 : i32
    %c0_i32_0 = arith.constant 0 : i32
    return %arg0, %c0_i32 : i32, i32
  }
  func.func @transform_10(%arg0: i32) -> (i32, i32) {
    %c0_i32 = arith.constant 0 : i32
    %c0_i32_0 = arith.constant 0 : i32
    return %arg0, %c0_i32 : i32, i32
  }
  func.func @transform_11(%arg0: i32) -> (i32, i32) {
    %c0_i32 = arith.constant 0 : i32
    %c0_i32_0 = arith.constant 0 : i32
    return %arg0, %c0_i32 : i32, i32
  }
}

</mosaic_0001>

<llo_original>
// kernel: tpu_custom_call.1
$region0: #{tpu_custom_call.1}
  #allocation0 [shape = 'u32[]', space=smem, size = 0x4, offset = 0x4, fixed_abs, tag = 'smem constant byte address 0x4 - core index']
  #allocation1 [shape = 'u32[144,128]{1,0:T(1,128)}', space=vmem, size = 0x12000, scoped, tag = 'internal scratch']
  %s0 = inlined_call_operand.vmem [shape: f32[128,8], index: 0, kind: input, shape index: {}]
  %s1 = inlined_call_operand.vmem [shape: f32[6,8], index: 1, kind: input, shape index: {}]
  %s2 = inlined_call_operand.vmem [shape: f32[4,6], index: 2, kind: input, shape index: {}]
  %s3 = inlined_call_operand.vmem [shape: f32[4,6], index: 3, kind: input, shape index: {}]
  %s4 = inlined_call_operand.vmem [shape: f32[6,4], index: 4, kind: input, shape index: {}]
  %s5 = inlined_call_operand.vmem [shape: f32[6,4], index: 5, kind: input, shape index: {}]
  %s6 = inlined_call_operand.vmem [shape: f32[6,4], index: 6, kind: input, shape index: {}]
  %s7 = inlined_call_operand.vmem [shape: f32[6,8], index: 7, kind: input, shape index: {}]
  %s8 = inlined_call_operand.vmem [shape: f32[4,128], index: 8, kind: input, shape index: {}]
  %s9 = inlined_call_operand.vmem [shape: f32[128,8], index: 9, kind: output, shape index: {0}]
  %s10 = inlined_call_operand.vmem [shape: f32[128,4], index: 10, kind: output, shape index: {1}]
  %s11 = inlined_call_operand.vmem [shape: f32[128,4], index: 11, kind: output, shape index: {2}]
  %12 = xla_tuple %s9, %s10, %s11
  %s13 = sld [smem:[#allocation0]]
  $region62: #{tpu_custom_call.1} parent=0
    _
  %s15 = ssub.s32 1, %s13
  %s16 = scalar_select 0, %s15, %s13
  // Predicated region
  $region2: #{tpu_custom_call.1} parent=0 // pred_check
    _
  $region3: #{tpu_custom_call.1} parent=0 // pred_check_branch
    %18 = sbr.rel (0) target = $region5
  $region4: #{tpu_custom_call.1} parent=0 // pred_region
    _
  $region5: #{tpu_custom_call.1} parent=0 // pred_fallthru
    _
  // Predicated region
  $region6: #{tpu_custom_call.1} parent=0 // pred_check
    _
  $region7: #{tpu_custom_call.1} parent=0 // pred_check_branch
    %20 = sbr.rel (0) target = $region9
  $region8: #{tpu_custom_call.1} parent=0 // pred_region
    _
  $region9: #{tpu_custom_call.1} parent=0 // pred_fallthru
    _
  // Predicated region
  $region10: #{tpu_custom_call.1} parent=0 // pred_check
    _
  $region11: #{tpu_custom_call.1} parent=0 // pred_check_branch
    %22 = sbr.rel (0) target = $region13
  $region12: #{tpu_custom_call.1} parent=0 // pred_region
    _
  $region13: #{tpu_custom_call.1} parent=0 // pred_fallthru
    _
  // Predicated region
  $region14: #{tpu_custom_call.1} parent=0 // pred_check
    _
  $region15: #{tpu_custom_call.1} parent=0 // pred_check_branch
    %24 = sbr.rel (0) target = $region17
  $region16: #{tpu_custom_call.1} parent=0 // pred_region
    _
  $region17: #{tpu_custom_call.1} parent=0 // pred_fallthru
    _
  // Predicated region
  $region18: #{tpu_custom_call.1} parent=0 // pred_check
    _
  $region19: #{tpu_custom_call.1} parent=0 // pred_check_branch
    %26 = sbr.rel (0) target = $region21
  $region20: #{tpu_custom_call.1} parent=0 // pred_region
    _
  $region21: #{tpu_custom_call.1} parent=0 // pred_fallthru
    _
  // Predicated region
  $region22: #{tpu_custom_call.1} parent=0 // pred_check
    _
  $region23: #{tpu_custom_call.1} parent=0 // pred_check_branch
    %28 = sbr.rel (0) target = $region25
  $region24: #{tpu_custom_call.1} parent=0 // pred_region
    _
  $region25: #{tpu_custom_call.1} parent=0 // pred_fallthru
    _
  // Predicated region
  $region26: #{tpu_custom_call.1} parent=0 // pred_check
    _
  $region27: #{tpu_custom_call.1} parent=0 // pred_check_branch
    %30 = sbr.rel (0) target = $region29
  $region28: #{tpu_custom_call.1} parent=0 // pred_region
    _
  $region29: #{tpu_custom_call.1} parent=0 // pred_fallthru
    _
  // Predicated region
  $region30: #{tpu_custom_call.1} parent=0 // pred_check
    _
  $region31: #{tpu_custom_call.1} parent=0 // pred_check_branch
    %32 = sbr.rel (0) target = $region33
  $region32: #{tpu_custom_call.1} parent=0 // pred_region
    _
  $region33: #{tpu_custom_call.1} parent=0 // pred_fallthru
    _
  // Predicated region
  $region34: #{tpu_custom_call.1} parent=0 // pred_check
    _
  $region35: #{tpu_custom_call.1} parent=0 // pred_check_branch
    %34 = sbr.rel (0) target = $region37
  $region36: #{tpu_custom_call.1} parent=0 // pred_region
    _
  $region37: #{tpu_custom_call.1} parent=0 // pred_fallthru
    _
  %v35 = vld [vmem:[%s0] sm:$0xff]
  %v36 = vld [vmem:[%s0 + $0x8] sm:$0xff]
  %v37 = vld [vmem:[%s0 + $0x10] sm:$0xff]
  %v38 = vld [vmem:[%s0 + $0x18] sm:$0xff]
  %v39 = vld [vmem:[%s0 + $0x20] sm:$0xff]
  %v40 = vld [vmem:[%s0 + $0x28] sm:$0xff]
  %v41 = vld [vmem:[%s0 + $0x30] sm:$0xff]
  %v42 = vld [vmem:[%s0 + $0x38] sm:$0xff]
  %v43 = vld [vmem:[%s0 + $0x40] sm:$0xff]
  %v44 = vld [vmem:[%s0 + $0x48] sm:$0xff]
  %v45 = vld [vmem:[%s0 + $0x50] sm:$0xff]
  %v46 = vld [vmem:[%s0 + $0x58] sm:$0xff]
  %v47 = vld [vmem:[%s0 + $0x60] sm:$0xff]
  %v48 = vld [vmem:[%s0 + $0x68] sm:$0xff]
  %v49 = vld [vmem:[%s0 + $0x70] sm:$0xff]
  %v50 = vld [vmem:[%s0 + $0x78] sm:$0xff]
  %v51 = vld [vmem:[%s1] sm:$0x3f]
  %v52 = vld [vmem:[%s2] sm:$0xf]
  %v53 = vld [vmem:[%s3] sm:$0xf]
  %v54 = vld [vmem:[%s4] sm:$0x3f]
  %v55 = vld [vmem:[%s5] sm:$0x3f]
  %v56 = vld [vmem:[%s6] sm:$0x3f]
  %v57 = vld [vmem:[%s7] sm:$0x3f]
  %v58 = vld [vmem:[%s8] sm:$0xf]
  %vm59 = vcmask 64512
  %v61 = vsel %vm59, %v51, 0
  %v64 = vsel %vm59, %v35, 0
  %v67 = vsel %vm59, %v36, 0
  %v70 = vsel %vm59, %v37, 0
  %v73 = vsel %vm59, %v38, 0
  %v76 = vsel %vm59, %v39, 0
  %v79 = vsel %vm59, %v40, 0
  %v82 = vsel %vm59, %v41, 0
  %v85 = vsel %vm59, %v42, 0
  %v88 = vsel %vm59, %v43, 0
  %v91 = vsel %vm59, %v44, 0
  %v94 = vsel %vm59, %v45, 0
  %v97 = vsel %vm59, %v46, 0
  %v100 = vsel %vm59, %v47, 0
  %v103 = vsel %vm59, %v48, 0
  %v106 = vsel %vm59, %v49, 0
  %v109 = vsel %vm59, %v50, 0
  %111 = vmatprep.subr.mxu0 0.0
  %112 = vmatpush1.xpose.msra.mxu0 %v64
  %113 = vmatprep.subr.mxu0 0.0
  %114 = vmatpush1.xpose.msra.mxu0 %v67
  %115 = vmatprep.subr.mxu0 0.0
  %116 = vmatpush1.xpose.msra.mxu0 %v70
  %117 = vmatprep.subr.mxu0 0.0
  %118 = vmatpush1.xpose.msra.mxu0 %v73
  %119 = vmatprep.subr.mxu0 0.0
  %120 = vmatpush1.xpose.msra.mxu0 %v76
  %121 = vmatprep.subr.mxu0 0.0
  %122 = vmatpush1.xpose.msra.mxu0 %v79
  %123 = vmatprep.subr.mxu0 0.0
  %124 = vmatpush1.xpose.msra.mxu0 %v82
  %125 = vmatprep.subr.mxu0 0.0
  %126 = vmatpush1.xpose.msra.mxu0 %v85
  %127 = vmatprep.subr.mxu0 0.0
  %128 = vmatpush1.xpose.msra.mxu0 %v88
  %129 = vmatprep.subr.mxu0 0.0
  %130 = vmatpush1.xpose.msra.mxu0 %v91
  %131 = vmatprep.subr.mxu0 0.0
  %132 = vmatpush1.xpose.msra.mxu0 %v94
  %133 = vmatprep.subr.mxu0 0.0
  %134 = vmatpush1.xpose.msra.mxu0 %v97
  %135 = vmatprep.subr.mxu0 0.0
  %136 = vmatpush1.xpose.msra.mxu0 %v100
  %137 = vmatprep.subr.mxu0 0.0
  %138 = vmatpush1.xpose.msra.mxu0 %v103
  %139 = vmatprep.subr.mxu0 0.0
  %140 = vmatpush1.xpose.msra.mxu0 %v106
  %141 = vmatprep.subr.mxu0 0.0
  %142 = vmatpush1.xpose.msra.mxu0 %v109
  %143 = vmatprep.subr.mxu0 0.0
  %144 = vmatpush1.xpose.msra.mxu0 0.0
  %145 = vmatprep.subr.mxu0 0.0
  %146 = vmatpush1.xpose.msra.mxu0 0.0
  %147 = vmatprep.subr.mxu0 0.0
  %148 = vmatpush1.xpose.msra.mxu0 0.0
  %149 = vmatprep.subr.mxu0 0.0
  %150 = vmatpush1.xpose.msra.mxu0 0.0
  %151 = vmatprep.subr.mxu0 0.0
  %152 = vmatpush1.xpose.msra.mxu0 0.0
  %153 = vmatprep.subr.mxu0 0.0
  %154 = vmatpush1.xpose.msra.mxu0 0.0
  %155 = vmatprep.subr.mxu0 0.0
  %156 = vmatpush1.xpose.msra.mxu0 0.0
  %157 = vmatprep.subr.mxu0 0.0
  %158 = vmatpush1.xpose.msra.mxu0 0.0
  %159 = vmatprep.subr.mxu0 0.0
  %160 = vmatpush1.xpose.msra.mxu0 0.0
  %161 = vmatprep.subr.mxu0 0.0
  %162 = vmatpush1.xpose.msra.mxu0 0.0
  %163 = vmatprep.subr.mxu0 0.0
  %164 = vmatpush1.xpose.msra.mxu0 0.0
  %165 = vmatprep.subr.mxu0 0.0
  %166 = vmatpush1.xpose.msra.mxu0 0.0
  %167 = vmatprep.subr.mxu0 0.0
  %168 = vmatpush1.xpose.msra.mxu0 0.0
  %169 = vmatprep.subr.mxu0 0.0
  %170 = vmatpush1.xpose.msra.mxu0 0.0
  %171 = vmatprep.subr.mxu0 0.0
  %172 = vmatpush1.xpose.msra.mxu0 0.0
  %173 = vmatprep.subr.mxu0 0.0
  %174 = vmatpush1.xpose.msra.mxu0 0.0
  %175 = vmatprep.mubr.f32.mxu0 0.0
  %176 = vmatmul.mubr.f32.gmra.mrb[0].mxu0 %v61
  %v177 = vpop.f32.mrb[0].mxu0
  %v178 = vadd.f32 0.0, %v177
  %v179 = vpop.f32.mrb[0].mxu0
  %180 = vdwg.mxu0
  %vm181 = vcmp.gt.f32.partialorder %v178, 0.0
  %v182 = vmin.f32 %v178, 0.0
  %v183 = vmul.f32 %v182, 1.442695
  %v184 = vpow.pop %v183
  %v185 = vsub.f32 %v184, 1.0
  %v186 = vsel %vm181, %v178, %v185
  %vm187 = vcmask 48128
  %v189 = vsel %vm187, %v53, 0
  %vm191 = vcmask 1045504
  %v193 = vsel %vm191, %v186, 0
  %195 = vmatprep.subr.mxu0 0.0
  %196 = vmatpush1.msra.mxu0 %v193
  %197 = vmatprep.subr.mxu0 0.0
  %198 = vmatpush1.msra.mxu0 0.0
  %199 = vmatprep.subr.mxu0 0.0
  %200 = vmatpush1.msra.mxu0 0.0
  %201 = vmatprep.subr.mxu0 0.0
  %202 = vmatpush1.msra.mxu0 0.0
  %203 = vmatprep.subr.mxu0 0.0
  %204 = vmatpush1.msra.mxu0 0.0
  %205 = vmatprep.subr.mxu0 0.0
  %206 = vmatpush1.msra.mxu0 0.0
  %207 = vmatprep.subr.mxu0 0.0
  %208 = vmatpush1.msra.mxu0 0.0
  %209 = vmatprep.subr.mxu0 0.0
  %210 = vmatpush1.msra.mxu0 0.0
  %211 = vmatprep.subr.mxu0 0.0
  %212 = vmatpush1.msra.mxu0 0.0
  %213 = vmatprep.subr.mxu0 0.0
  %214 = vmatpush1.msra.mxu0 0.0
  %215 = vmatprep.subr.mxu0 0.0
  %216 = vmatpush1.msra.mxu0 0.0
  %217 = vmatprep.subr.mxu0 0.0
  %218 = vmatpush1.msra.mxu0 0.0
  %219 = vmatprep.subr.mxu0 0.0
  %220 = vmatpush1.msra.mxu0 0.0
  %221 = vmatprep.subr.mxu0 0.0
  %222 = vmatpush1.msra.mxu0 0.0
  %223 = vmatprep.subr.mxu0 0.0
  %224 = vmatpush1.msra.mxu0 0.0
  %225 = vmatprep.subr.mxu0 0.0
  %226 = vmatpush1.msra.mxu0 0.0
  %227 = vmatprep.subr.mxu0 0.0
  %228 = vmatpush1.msra.mxu0 0.0
  %229 = vmatprep.subr.mxu0 0.0
  %230 = vmatpush1.msra.mxu0 0.0
  %231 = vmatprep.subr.mxu0 0.0
  %232 = vmatpush1.msra.mxu0 0.0
  %233 = vmatprep.subr.mxu0 0.0
  %234 = vmatpush1.msra.mxu0 0.0
  %235 = vmatprep.subr.mxu0 0.0
  %236 = vmatpush1.msra.mxu0 0.0
  %237 = vmatprep.subr.mxu0 0.0
  %238 = vmatpush1.msra.mxu0 0.0
  %239 = vmatprep.subr.mxu0 0.0
  %240 = vmatpush1.msra.mxu0 0.0
  %241 = vmatprep.subr.mxu0 0.0
  %242 = vmatpush1.msra.mxu0 0.0
  %243 = vmatprep.subr.mxu0 0.0
  %244 = vmatpush1.msra.mxu0 0.0
  %245 = vmatprep.subr.mxu0 0.0
  %246 = vmatpush1.msra.mxu0 0.0
  %247 = vmatprep.subr.mxu0 0.0
  %248 = vmatpush1.msra.mxu0 0.0
  %249 = vmatprep.subr.mxu0 0.0
  %250 = vmatpush1.msra.mxu0 0.0
  %251 = vmatprep.subr.mxu0 0.0
  %252 = vmatpush1.msra.mxu0 0.0
  %253 = vmatprep.subr.mxu0 0.0
  %254 = vmatpush1.msra.mxu0 0.0
  %255 = vmatprep.subr.mxu0 0.0
  %256 = vmatpush1.msra.mxu0 0.0
  %257 = vmatprep.subr.mxu0 0.0
  %258 = vmatpush1.msra.mxu0 0.0
  %259 = vmatprep.mubr.f32.mxu0 0.0
  %260 = vmatmul.mubr.f32.gmra.mrb[0].mxu0 %v189
  %v261 = vpop.f32.mrb[0].mxu0
  %v262 = vadd.f32 0.0, %v261
  %v263 = vpop.f32.mrb[0].mxu0
  %264 = vdwg.mxu0
  %v265 = vmul.f32 %v262, 0.5
  %v266 = vmul.f32 %v265, 1.442695
  %v267 = vpow.pop %v266
  %v268 = vmul.f32 %v58, %v267
  %v270 = vsel %vm187, %v52, 0
  %272 = vmatprep.subr.mxu0 0.0
  %273 = vmatpush1.msra.mxu0 %v193
  %274 = vmatprep.subr.mxu0 0.0
  %275 = vmatpush1.msra.mxu0 0.0
  %276 = vmatprep.subr.mxu0 0.0
  %277 = vmatpush1.msra.mxu0 0.0
  %278 = vmatprep.subr.mxu0 0.0
  %279 = vmatpush1.msra.mxu0 0.0
  %280 = vmatprep.subr.mxu0 0.0
  %281 = vmatpush1.msra.mxu0 0.0
  %282 = vmatprep.subr.mxu0 0.0
  %283 = vmatpush1.msra.mxu0 0.0
  %284 = vmatprep.subr.mxu0 0.0
  %285 = vmatpush1.msra.mxu0 0.0
  %286 = vmatprep.subr.mxu0 0.0
  %287 = vmatpush1.msra.mxu0 0.0
  %288 = vmatprep.subr.mxu0 0.0
  %289 = vmatpush1.msra.mxu0 0.0
  %290 = vmatprep.subr.mxu0 0.0
  %291 = vmatpush1.msra.mxu0 0.0
  %292 = vmatprep.subr.mxu0 0.0
  %293 = vmatpush1.msra.mxu0 0.0
  %294 = vmatprep.subr.mxu0 0.0
  %295 = vmatpush1.msra.mxu0 0.0
  %296 = vmatprep.subr.mxu0 0.0
  %297 = vmatpush1.msra.mxu0 0.0
  %298 = vmatprep.subr.mxu0 0.0
  %299 = vmatpush1.msra.mxu0 0.0
  %300 = vmatprep.subr.mxu0 0.0
  %301 = vmatpush1.msra.mxu0 0.0
  %302 = vmatprep.subr.mxu0 0.0
  %303 = vmatpush1.msra.mxu0 0.0
  %304 = vmatprep.subr.mxu0 0.0
  %305 = vmatpush1.msra.mxu0 0.0
  %306 = vmatprep.subr.mxu0 0.0
  %307 = vmatpush1.msra.mxu0 0.0
  %308 = vmatprep.subr.mxu0 0.0
  %309 = vmatpush1.msra.mxu0 0.0
  %310 = vmatprep.subr.mxu0 0.0
  %311 = vmatpush1.msra.mxu0 0.0
  %312 = vmatprep.subr.mxu0 0.0
  %313 = vmatpush1.msra.mxu0 0.0
  %314 = vmatprep.subr.mxu0 0.0
  %315 = vmatpush1.msra.mxu0 0.0
  %316 = vmatprep.subr.mxu0 0.0
  %317 = vmatpush1.msra.mxu0 0.0
  %318 = vmatprep.subr.mxu0 0.0
  %319 = vmatpush1.msra.mxu0 0.0
  %320 = vmatprep.subr.mxu0 0.0
  %321 = vmatpush1.msra.mxu0 0.0
  %322 = vmatprep.subr.mxu0 0.0
  %323 = vmatpush1.msra.mxu0 0.0
  %324 = vmatprep.subr.mxu0 0.0
  %325 = vmatpush1.msra.mxu0 0.0
  %326 = vmatprep.subr.mxu0 0.0
  %327 = vmatpush1.msra.mxu0 0.0
  %328 = vmatprep.subr.mxu0 0.0
  %329 = vmatpush1.msra.mxu0 0.0
  %330 = vmatprep.subr.mxu0 0.0
  %331 = vmatpush1.msra.mxu0 0.0
  %332 = vmatprep.subr.mxu0 0.0
  %333 = vmatpush1.msra.mxu0 0.0
  %334 = vmatprep.subr.mxu0 0.0
  %335 = vmatpush1.msra.mxu0 0.0
  %336 = vmatprep.mubr.f32.mxu0 0.0
  %337 = vmatmul.mubr.f32.gmra.mrb[0].mxu0 %v270
  %v338 = vpop.f32.mrb[0].mxu0
  %v339 = vadd.f32 %v268, %v338
  %v340 = vpop.f32.mrb[0].mxu0
  %341 = vdwg.mxu0
  %vm342 = vcmask 31744
  %v344 = vsel %vm342, %v54, 0
  %vm346 = vcmask 1043456
  %v348 = vsel %vm346, %v339, 0
  %350 = vmatprep.subr.mxu0 0.0
  %351 = vmatpush1.msra.mxu0 %v348
  %352 = vmatprep.subr.mxu0 0.0
  %353 = vmatpush1.msra.mxu0 0.0
  %354 = vmatprep.subr.mxu0 0.0
  %355 = vmatpush1.msra.mxu0 0.0
  %356 = vmatprep.subr.mxu0 0.0
  %357 = vmatpush1.msra.mxu0 0.0
  %358 = vmatprep.subr.mxu0 0.0
  %359 = vmatpush1.msra.mxu0 0.0
  %360 = vmatprep.subr.mxu0 0.0
  %361 = vmatpush1.msra.mxu0 0.0
  %362 = vmatprep.subr.mxu0 0.0
  %363 = vmatpush1.msra.mxu0 0.0
  %364 = vmatprep.subr.mxu0 0.0
  %365 = vmatpush1.msra.mxu0 0.0
  %366 = vmatprep.subr.mxu0 0.0
  %367 = vmatpush1.msra.mxu0 0.0
  %368 = vmatprep.subr.mxu0 0.0
  %369 = vmatpush1.msra.mxu0 0.0
  %370 = vmatprep.subr.mxu0 0.0
  %371 = vmatpush1.msra.mxu0 0.0
  %372 = vmatprep.subr.mxu0 0.0
  %373 = vmatpush1.msra.mxu0 0.0
  %374 = vmatprep.subr.mxu0 0.0
  %375 = vmatpush1.msra.mxu0 0.0
  %376 = vmatprep.subr.mxu0 0.0
  %377 = vmatpush1.msra.mxu0 0.0
  %378 = vmatprep.subr.mxu0 0.0
  %379 = vmatpush1.msra.mxu0 0.0
  %380 = vmatprep.subr.mxu0 0.0
  %381 = vmatpush1.msra.mxu0 0.0
  %382 = vmatprep.subr.mxu0 0.0
  %383 = vmatpush1.msra.mxu0 0.0
  %384 = vmatprep.subr.mxu0 0.0
  %385 = vmatpush1.msra.mxu0 0.0
  %386 = vmatprep.subr.mxu0 0.0
  %387 = vmatpush1.msra.mxu0 0.0
  %388 = vmatprep.subr.mxu0 0.0
  %389 = vmatpush1.msra.mxu0 0.0
  %390 = vmatprep.subr.mxu0 0.0
  %391 = vmatpush1.msra.mxu0 0.0
  %392 = vmatprep.subr.mxu0 0.0
  %393 = vmatpush1.msra.mxu0 0.0
  %394 = vmatprep.subr.mxu0 0.0
  %395 = vmatpush1.msra.mxu0 0.0
  %396 = vmatprep.subr.mxu0 0.0
  %397 = vmatpush1.msra.mxu0 0.0
  %398 = vmatprep.subr.mxu0 0.0
  %399 = vmatpush1.msra.mxu0 0.0
  %400 = vmatprep.subr.mxu0 0.0
  %401 = vmatpush1.msra.mxu0 0.0
  %402 = vmatprep.subr.mxu0 0.0
  %403 = vmatpush1.msra.mxu0 0.0
  %404 = vmatprep.subr.mxu0 0.0
  %405 = vmatpush1.msra.mxu0 0.0
  %406 = vmatprep.subr.mxu0 0.0
  %407 = vmatpush1.msra.mxu0 0.0
  %408 = vmatprep.subr.mxu0 0.0
  %409 = vmatpush1.msra.mxu0 0.0
  %410 = vmatprep.subr.mxu0 0.0
  %411 = vmatpush1.msra.mxu0 0.0
  %412 = vmatprep.subr.mxu0 0.0
  %413 = vmatpush1.msra.mxu0 0.0
  %414 = vmatprep.mubr.f32.mxu0 0.0
  %415 = vmatmul.mubr.f32.gmra.mrb[0].mxu0 %v344
  %v416 = vpop.f32.mrb[0].mxu0
  %v417 = vadd.f32 0.0, %v416
  %v418 = vpop.f32.mrb[0].mxu0
  %419 = vdwg.mxu0
  %vm420 = vcmp.gt.f32.partialorder %v417, 0.0
  %v421 = vmin.f32 %v417, 0.0
  %v422 = vmul.f32 %v421, 1.442695
  %v423 = vpow.pop %v422
  %v424 = vsub.f32 %v423, 1.0
  %v425 = vsel %vm420, %v417, %v424
  %426 = vxpose.xlu0.b32.start [1/16] %v425, 128
  %427 = vxpose.xlu0.b32.cont [2/16] 0.0, 128
  %428 = vxpose.xlu0.b32.cont [3/16] 0.0, 128
  %429 = vxpose.xlu0.b32.cont [4/16] 0.0, 128
  %430 = vxpose.xlu0.b32.cont [5/16] 0.0, 128
  %431 = vxpose.xlu0.b32.cont [6/16] 0.0, 128
  %432 = vxpose.xlu0.b32.cont [7/16] 0.0, 128
  %433 = vxpose.xlu0.b32.cont [8/16] 0.0, 128
  %434 = vxpose.xlu0.b32.cont [9/16] 0.0, 128
  %435 = vxpose.xlu0.b32.cont [10/16] 0.0, 128
  %436 = vxpose.xlu0.b32.cont [11/16] 0.0, 128
  %437 = vxpose.xlu0.b32.cont [12/16] 0.0, 128
  %438 = vxpose.xlu0.b32.cont [13/16] 0.0, 128
  %439 = vxpose.xlu0.b32.cont [14/16] 0.0, 128
  %440 = vxpose.xlu0.b32.cont [15/16] 0.0, 128
  %441 = vxpose.xlu0.b32.end [16/16] 0.0, 128
  %v442 = vpop.trf.xlu0
  %v443 = vpop.trf.xlu0
  %v444 = vpop.trf.xlu0
  %v445 = vpop.trf.xlu0
  %v446 = vpop.trf.xlu0
  %v447 = vpop.trf.xlu0
  %v448 = vpop.trf.xlu0
  %v449 = vpop.trf.xlu0
  %v450 = vpop.trf.xlu0
  %v451 = vpop.trf.xlu0
  %v452 = vpop.trf.xlu0
  %v453 = vpop.trf.xlu0
  %v454 = vpop.trf.xlu0
  %v455 = vpop.trf.xlu0
  %v456 = vpop.trf.xlu0
  %v457 = vpop.trf.xlu0
  %v459 = vsel %vm187, %v442, 0
  %v462 = vsel %vm187, %v443, 0
  %v465 = vsel %vm187, %v444, 0
  %v468 = vsel %vm187, %v445, 0
  %v471 = vsel %vm187, %v446, 0
  %v474 = vsel %vm187, %v447, 0
  %v477 = vsel %vm187, %v448, 0
  %v480 = vsel %vm187, %v449, 0
  %v483 = vsel %vm187, %v450, 0
  %v486 = vsel %vm187, %v451, 0
  %v489 = vsel %vm187, %v452, 0
  %v492 = vsel %vm187, %v453, 0
  %v495 = vsel %vm187, %v454, 0
  %v498 = vsel %vm187, %v455, 0
  %v501 = vsel %vm187, %v456, 0
  %v504 = vsel %vm187, %v457, 0
  %v507 = vsel %vm191, %v57, 0
  %509 = vmatprep.subr.mxu0 0.0
  %510 = vmatpush1.msra.mxu0 %v507
  %511 = vmatprep.subr.mxu0 0.0
  %512 = vmatpush1.msra.mxu0 0.0
  %513 = vmatprep.subr.mxu0 0.0
  %514 = vmatpush1.msra.mxu0 0.0
  %515 = vmatprep.subr.mxu0 0.0
  %516 = vmatpush1.msra.mxu0 0.0
  %517 = vmatprep.subr.mxu0 0.0
  %518 = vmatpush1.msra.mxu0 0.0
  %519 = vmatprep.subr.mxu0 0.0
  %520 = vmatpush1.msra.mxu0 0.0
  %521 = vmatprep.subr.mxu0 0.0
  %522 = vmatpush1.msra.mxu0 0.0
  %523 = vmatprep.subr.mxu0 0.0
  %524 = vmatpush1.msra.mxu0 0.0
  %525 = vmatprep.subr.mxu0 0.0
  %526 = vmatpush1.msra.mxu0 0.0
  %527 = vmatprep.subr.mxu0 0.0
  %528 = vmatpush1.msra.mxu0 0.0
  %529 = vmatprep.subr.mxu0 0.0
  %530 = vmatpush1.msra.mxu0 0.0
  %531 = vmatprep.subr.mxu0 0.0
  %532 = vmatpush1.msra.mxu0 0.0
  %533 = vmatprep.subr.mxu0 0.0
  %534 = vmatpush1.msra.mxu0 0.0
  %535 = vmatprep.subr.mxu0 0.0
  %536 = vmatpush1.msra.mxu0 0.0
  %537 = vmatprep.subr.mxu0 0.0
  %538 = vmatpush1.msra.mxu0 0.0
  %539 = vmatprep.subr.mxu0 0.0
  %540 = vmatpush1.msra.mxu0 0.0
  %541 = vmatprep.subr.mxu0 0.0
  %542 = vmatpush1.msra.mxu0 0.0
  %543 = vmatprep.subr.mxu0 0.0
  %544 = vmatpush1.msra.mxu0 0.0
  %545 = vmatprep.subr.mxu0 0.0
  %546 = vmatpush1.msra.mxu0 0.0
  %547 = vmatprep.subr.mxu0 0.0
  %548 = vmatpush1.msra.mxu0 0.0
  %549 = vmatprep.subr.mxu0 0.0
  %550 = vmatpush1.msra.mxu0 0.0
  %551 = vmatprep.subr.mxu0 0.0
  %552 = vmatpush1.msra.mxu0 0.0
  %553 = vmatprep.subr.mxu0 0.0
  %554 = vmatpush1.msra.mxu0 0.0
  %555 = vmatprep.subr.mxu0 0.0
  %556 = vmatpush1.msra.mxu0 0.0
  %557 = vmatprep.subr.mxu0 0.0
  %558 = vmatpush1.msra.mxu0 0.0
  %559 = vmatprep.subr.mxu0 0.0
  %560 = vmatpush1.msra.mxu0 0.0
  %561 = vmatprep.subr.mxu0 0.0
  %562 = vmatpush1.msra.mxu0 0.0
  %563 = vmatprep.subr.mxu0 0.0
  %564 = vmatpush1.msra.mxu0 0.0
  %565 = vmatprep.subr.mxu0 0.0
  %566 = vmatpush1.msra.mxu0 0.0
  %567 = vmatprep.subr.mxu0 0.0
  %568 = vmatpush1.msra.mxu0 0.0
  %569 = vmatprep.subr.mxu0 0.0
  %570 = vmatpush1.msra.mxu0 0.0
  %571 = vmatprep.subr.mxu0 0.0
  %572 = vmatpush1.msra.mxu0 0.0
  %573 = vmatprep.mubr.f32.mxu0 0.0
  %574 = vmatmul.mubr.f32.gmra.mrb[0].mxu0 %v459
  %v575 = vpop.f32.mrb[0].mxu0
  %v576 = vadd.f32 0.0, %v575
  %v577 = vpop.f32.mrb[0].mxu0
  %578 = vmatprep.mubr.f32.mxu0 0.0
  %579 = vmatmul.mubr.f32.gmra.mrb[0].mxu0 %v462
  %v580 = vpop.f32.mrb[0].mxu0
  %v581 = vadd.f32 0.0, %v580
  %v582 = vpop.f32.mrb[0].mxu0
  %583 = vmatprep.mubr.f32.mxu0 0.0
  %584 = vmatmul.mubr.f32.gmra.mrb[0].mxu0 %v465
  %v585 = vpop.f32.mrb[0].mxu0
  %v586 = vadd.f32 0.0, %v585
  %v587 = vpop.f32.mrb[0].mxu0
  %588 = vmatprep.mubr.f32.mxu0 0.0
  %589 = vmatmul.mubr.f32.gmra.mrb[0].mxu0 %v468
  %v590 = vpop.f32.mrb[0].mxu0
  %v591 = vadd.f32 0.0, %v590
  %v592 = vpop.f32.mrb[0].mxu0
  %593 = vmatprep.mubr.f32.mxu0 0.0
  %594 = vmatmul.mubr.f32.gmra.mrb[0].mxu0 %v471
  %v595 = vpop.f32.mrb[0].mxu0
  %v596 = vadd.f32 0.0, %v595
  %v597 = vpop.f32.mrb[0].mxu0
  %598 = vmatprep.mubr.f32.mxu0 0.0
  %599 = vmatmul.mubr.f32.gmra.mrb[0].mxu0 %v474
  %v600 = vpop.f32.mrb[0].mxu0
  %v601 = vadd.f32 0.0, %v600
  %v602 = vpop.f32.mrb[0].mxu0
  %603 = vmatprep.mubr.f32.mxu0 0.0
  %604 = vmatmul.mubr.f32.gmra.mrb[0].mxu0 %v477
  %v605 = vpop.f32.mrb[0].mxu0
  %v606 = vadd.f32 0.0, %v605
  %v607 = vpop.f32.mrb[0].mxu0
  %608 = vmatprep.mubr.f32.mxu0 0.0
  %609 = vmatmul.mubr.f32.gmra.mrb[0].mxu0 %v480
  %v610 = vpop.f32.mrb[0].mxu0
  %v611 = vadd.f32 0.0, %v610
  %v612 = vpop.f32.mrb[0].mxu0
  %613 = vmatprep.mubr.f32.mxu0 0.0
  %614 = vmatmul.mubr.f32.gmra.mrb[0].mxu0 %v483
  %v615 = vpop.f32.mrb[0].mxu0
  %v616 = vadd.f32 0.0, %v615
  %v617 = vpop.f32.mrb[0].mxu0
  %618 = vmatprep.mubr.f32.mxu0 0.0
  %619 = vmatmul.mubr.f32.gmra.mrb[0].mxu0 %v486
  %v620 = vpop.f32.mrb[0].mxu0
  %v621 = vadd.f32 0.0, %v620
  %v622 = vpop.f32.mrb[0].mxu0
  %623 = vmatprep.mubr.f32.mxu0 0.0
  %624 = vmatmul.mubr.f32.gmra.mrb[0].mxu0 %v489
  %v625 = vpop.f32.mrb[0].mxu0
  %v626 = vadd.f32 0.0, %v625
  %v627 = vpop.f32.mrb[0].mxu0
  %628 = vmatprep.mubr.f32.mxu0 0.0
  %629 = vmatmul.mubr.f32.gmra.mrb[0].mxu0 %v492
  %v630 = vpop.f32.mrb[0].mxu0
  %v631 = vadd.f32 0.0, %v630
  %v632 = vpop.f32.mrb[0].mxu0
  %633 = vmatprep.mubr.f32.mxu0 0.0
  %634 = vmatmul.mubr.f32.gmra.mrb[0].mxu0 %v495
  %v635 = vpop.f32.mrb[0].mxu0
  %v636 = vadd.f32 0.0, %v635
  %v637 = vpop.f32.mrb[0].mxu0
  %638 = vmatprep.mubr.f32.mxu0 0.0
  %639 = vmatmul.mubr.f32.gmra.mrb[0].mxu0 %v498
  %v640 = vpop.f32.mrb[0].mxu0
  %v641 = vadd.f32 0.0, %v640
  %v642 = vpop.f32.mrb[0].mxu0
  %643 = vmatprep.mubr.f32.mxu0 0.0
  %644 = vmatmul.mubr.f32.gmra.mrb[0].mxu0 %v501
  %v645 = vpop.f32.mrb[0].mxu0
  %v646 = vadd.f32 0.0, %v645
  %v647 = vpop.f32.mrb[0].mxu0
  %648 = vmatprep.mubr.f32.mxu0 0.0
  %649 = vmatmul.mubr.f32.gmra.mrb[0].mxu0 %v504
  %v650 = vpop.f32.mrb[0].mxu0
  %v651 = vadd.f32 0.0, %v650
  %v652 = vpop.f32.mrb[0].mxu0
  %653 = vdwg.mxu0
  %654 = vxpose.xlu0.b32.start [1/16] %v186, 128
  %655 = vxpose.xlu0.b32.cont [2/16] 0.0, 128
  %656 = vxpose.xlu0.b32.cont [3/16] 0.0, 128
  %657 = vxpose.xlu0.b32.cont [4/16] 0.0, 128
  %658 = vxpose.xlu0.b32.cont [5/16] 0.0, 128
  %659 = vxpose.xlu0.b32.cont [6/16] 0.0, 128
  %660 = vxpose.xlu0.b32.cont [7/16] 0.0, 128
  %661 = vxpose.xlu0.b32.cont [8/16] 0.0, 128
  %662 = vxpose.xlu0.b32.cont [9/16] 0.0, 128
  %663 = vxpose.xlu0.b32.cont [10/16] 0.0, 128
  %664 = vxpose.xlu0.b32.cont [11/16] 0.0, 128
  %665 = vxpose.xlu0.b32.cont [12/16] 0.0, 128
  %666 = vxpose.xlu0.b32.cont [13/16] 0.0, 128
  %667 = vxpose.xlu0.b32.cont [14/16] 0.0, 128
  %668 = vxpose.xlu0.b32.cont [15/16] 0.0, 128
  %669 = vxpose.xlu0.b32.end [16/16] 0.0, 128
  %v670 = vpop.trf.xlu0
  %v671 = vpop.trf.xlu0
  %v672 = vpop.trf.xlu0
  %v673 = vpop.trf.xlu0
  %v674 = vpop.trf.xlu0
  %v675 = vpop.trf.xlu0
  %v676 = vpop.trf.xlu0
  %v677 = vpop.trf.xlu0
  %v678 = vpop.trf.xlu0
  %v679 = vpop.trf.xlu0
  %v680 = vpop.trf.xlu0
  %v681 = vpop.trf.xlu0
  %v682 = vpop.trf.xlu0
  %v683 = vpop.trf.xlu0
  %v684 = vpop.trf.xlu0
  %v685 = vpop.trf.xlu0
  %v687 = vsel %vm187, %v670, 0
  %v690 = vsel %vm187, %v671, 0
  %v693 = vsel %vm187, %v672, 0
  %v696 = vsel %vm187, %v673, 0
  %v699 = vsel %vm187, %v674, 0
  %v702 = vsel %vm187, %v675, 0
  %v705 = vsel %vm187, %v676, 0
  %v708 = vsel %vm187, %v677, 0
  %v711 = vsel %vm187, %v678, 0
  %v714 = vsel %vm187, %v679, 0
  %v717 = vsel %vm187, %v680, 0
  %v720 = vsel %vm187, %v681, 0
  %v723 = vsel %vm187, %v682, 0
  %v726 = vsel %vm187, %v683, 0
  %v729 = vsel %vm187, %v684, 0
  %v732 = vsel %vm187, %v685, 0
  %v735 = vsel %vm191, %v55, 0
  %737 = vmatprep.subr.mxu0 0.0
  %738 = vmatpush1.msra.mxu0 %v735
  %739 = vmatprep.subr.mxu0 0.0
  %740 = vmatpush1.msra.mxu0 0.0
  %741 = vmatprep.subr.mxu0 0.0
  %742 = vmatpush1.msra.mxu0 0.0
  %743 = vmatprep.subr.mxu0 0.0
  %744 = vmatpush1.msra.mxu0 0.0
  %745 = vmatprep.subr.mxu0 0.0
  %746 = vmatpush1.msra.mxu0 0.0
  %747 = vmatprep.subr.mxu0 0.0
  %748 = vmatpush1.msra.mxu0 0.0
  %749 = vmatprep.subr.mxu0 0.0
  %750 = vmatpush1.msra.mxu0 0.0
  %751 = vmatprep.subr.mxu0 0.0
  %752 = vmatpush1.msra.mxu0 0.0
  %753 = vmatprep.subr.mxu0 0.0
  %754 = vmatpush1.msra.mxu0 0.0
  %755 = vmatprep.subr.mxu0 0.0
  %756 = vmatpush1.msra.mxu0 0.0
  %757 = vmatprep.subr.mxu0 0.0
  %758 = vmatpush1.msra.mxu0 0.0
  %759 = vmatprep.subr.mxu0 0.0
  %760 = vmatpush1.msra.mxu0 0.0
  %761 = vmatprep.subr.mxu0 0.0
  %762 = vmatpush1.msra.mxu0 0.0
  %763 = vmatprep.subr.mxu0 0.0
  %764 = vmatpush1.msra.mxu0 0.0
  %765 = vmatprep.subr.mxu0 0.0
  %766 = vmatpush1.msra.mxu0 0.0
  %767 = vmatprep.subr.mxu0 0.0
  %768 = vmatpush1.msra.mxu0 0.0
  %769 = vmatprep.subr.mxu0 0.0
  %770 = vmatpush1.msra.mxu0 0.0
  %771 = vmatprep.subr.mxu0 0.0
  %772 = vmatpush1.msra.mxu0 0.0
  %773 = vmatprep.subr.mxu0 0.0
  %774 = vmatpush1.msra.mxu0 0.0
  %775 = vmatprep.subr.mxu0 0.0
  %776 = vmatpush1.msra.mxu0 0.0
  %777 = vmatprep.subr.mxu0 0.0
  %778 = vmatpush1.msra.mxu0 0.0
  %779 = vmatprep.subr.mxu0 0.0
  %780 = vmatpush1.msra.mxu0 0.0
  %781 = vmatprep.subr.mxu0 0.0
  %782 = vmatpush1.msra.mxu0 0.0
  %783 = vmatprep.subr.mxu0 0.0
  %784 = vmatpush1.msra.mxu0 0.0
  %785 = vmatprep.subr.mxu0 0.0
  %786 = vmatpush1.msra.mxu0 0.0
  %787 = vmatprep.subr.mxu0 0.0
  %788 = vmatpush1.msra.mxu0 0.0
  %789 = vmatprep.subr.mxu0 0.0
  %790 = vmatpush1.msra.mxu0 0.0
  %791 = vmatprep.subr.mxu0 0.0
  %792 = vmatpush1.msra.mxu0 0.0
  %793 = vmatprep.subr.mxu0 0.0
  %794 = vmatpush1.msra.mxu0 0.0
  %795 = vmatprep.subr.mxu0 0.0
  %796 = vmatpush1.msra.mxu0 0.0
  %797 = vmatprep.subr.mxu0 0.0
  %798 = vmatpush1.msra.mxu0 0.0
  %799 = vmatprep.subr.mxu0 0.0
  %800 = vmatpush1.msra.mxu0 0.0
  %801 = vmatprep.mubr.f32.mxu0 0.0
  %802 = vmatmul.mubr.f32.gmra.mrb[0].mxu0 %v687
  %v803 = vpop.f32.mrb[0].mxu0
  %v804 = vadd.f32 0.0, %v803
  %v805 = vpop.f32.mrb[0].mxu0
  %806 = vmatprep.mubr.f32.mxu0 0.0
  %807 = vmatmul.mubr.f32.gmra.mrb[0].mxu0 %v690
  %v808 = vpop.f32.mrb[0].mxu0
  %v809 = vadd.f32 0.0, %v808
  %v810 = vpop.f32.mrb[0].mxu0
  %811 = vmatprep.mubr.f32.mxu0 0.0
  %812 = vmatmul.mubr.f32.gmra.mrb[0].mxu0 %v693
  %v813 = vpop.f32.mrb[0].mxu0
  %v814 = vadd.f32 0.0, %v813
  %v815 = vpop.f32.mrb[0].mxu0
  %816 = vmatprep.mubr.f32.mxu0 0.0
  %817 = vmatmul.mubr.f32.gmra.mrb[0].mxu0 %v696
  %v818 = vpop.f32.mrb[0].mxu0
  %v819 = vadd.f32 0.0, %v818
  %v820 = vpop.f32.mrb[0].mxu0
  %821 = vmatprep.mubr.f32.mxu0 0.0
  %822 = vmatmul.mubr.f32.gmra.mrb[0].mxu0 %v699
  %v823 = vpop.f32.mrb[0].mxu0
  %v824 = vadd.f32 0.0, %v823
  %v825 = vpop.f32.mrb[0].mxu0
  %826 = vmatprep.mubr.f32.mxu0 0.0
  %827 = vmatmul.mubr.f32.gmra.mrb[0].mxu0 %v702
  %v828 = vpop.f32.mrb[0].mxu0
  %v829 = vadd.f32 0.0, %v828
  %v830 = vpop.f32.mrb[0].mxu0
  %831 = vmatprep.mubr.f32.mxu0 0.0
  %832 = vmatmul.mubr.f32.gmra.mrb[0].mxu0 %v705
  %v833 = vpop.f32.mrb[0].mxu0
  %v834 = vadd.f32 0.0, %v833
  %v835 = vpop.f32.mrb[0].mxu0
  %836 = vmatprep.mubr.f32.mxu0 0.0
  %837 = vmatmul.mubr.f32.gmra.mrb[0].mxu0 %v708
  %v838 = vpop.f32.mrb[0].mxu0
  %v839 = vadd.f32 0.0, %v838
  %v840 = vpop.f32.mrb[0].mxu0
  %841 = vmatprep.mubr.f32.mxu0 0.0
  %842 = vmatmul.mubr.f32.gmra.mrb[0].mxu0 %v711
  %v843 = vpop.f32.mrb[0].mxu0
  %v844 = vadd.f32 0.0, %v843
  %v845 = vpop.f32.mrb[0].mxu0
  %846 = vmatprep.mubr.f32.mxu0 0.0
  %847 = vmatmul.mubr.f32.gmra.mrb[0].mxu0 %v714
  %v848 = vpop.f32.mrb[0].mxu0
  %v849 = vadd.f32 0.0, %v848
  %v850 = vpop.f32.mrb[0].mxu0
  %851 = vmatprep.mubr.f32.mxu0 0.0
  %852 = vmatmul.mubr.f32.gmra.mrb[0].mxu0 %v717
  %v853 = vpop.f32.mrb[0].mxu0
  %v854 = vadd.f32 0.0, %v853
  %v855 = vpop.f32.mrb[0].mxu0
  %856 = vmatprep.mubr.f32.mxu0 0.0
  %857 = vmatmul.mubr.f32.gmra.mrb[0].mxu0 %v720
  %v858 = vpop.f32.mrb[0].mxu0
  %v859 = vadd.f32 0.0, %v858
  %v860 = vpop.f32.mrb[0].mxu0
  %861 = vmatprep.mubr.f32.mxu0 0.0
  %862 = vmatmul.mubr.f32.gmra.mrb[0].mxu0 %v723
  %v863 = vpop.f32.mrb[0].mxu0
  %v864 = vadd.f32 0.0, %v863
  %v865 = vpop.f32.mrb[0].mxu0
  %866 = vmatprep.mubr.f32.mxu0 0.0
  %867 = vmatmul.mubr.f32.gmra.mrb[0].mxu0 %v726
  %v868 = vpop.f32.mrb[0].mxu0
  %v869 = vadd.f32 0.0, %v868
  %v870 = vpop.f32.mrb[0].mxu0
  %871 = vmatprep.mubr.f32.mxu0 0.0
  %872 = vmatmul.mubr.f32.gmra.mrb[0].mxu0 %v729
  %v873 = vpop.f32.mrb[0].mxu0
  %v874 = vadd.f32 0.0, %v873
  %v875 = vpop.f32.mrb[0].mxu0
  %876 = vmatprep.mubr.f32.mxu0 0.0
  %877 = vmatmul.mubr.f32.gmra.mrb[0].mxu0 %v732
  %v878 = vpop.f32.mrb[0].mxu0
  %v879 = vadd.f32 0.0, %v878
  %v880 = vpop.f32.mrb[0].mxu0
  %881 = vdwg.mxu0
  %v883 = vsel %vm191, %v56, 0
  %885 = vmatprep.subr.mxu0 0.0
  %886 = vmatpush1.msra.mxu0 %v883
  %887 = vmatprep.subr.mxu0 0.0
  %888 = vmatpush1.msra.mxu0 0.0
  %889 = vmatprep.subr.mxu0 0.0
  %890 = vmatpush1.msra.mxu0 0.0
  %891 = vmatprep.subr.mxu0 0.0
  %892 = vmatpush1.msra.mxu0 0.0
  %893 = vmatprep.subr.mxu0 0.0
  %894 = vmatpush1.msra.mxu0 0.0
  %895 = vmatprep.subr.mxu0 0.0
  %896 = vmatpush1.msra.mxu0 0.0
  %897 = vmatprep.subr.mxu0 0.0
  %898 = vmatpush1.msra.mxu0 0.0
  %899 = vmatprep.subr.mxu0 0.0
  %900 = vmatpush1.msra.mxu0 0.0
  %901 = vmatprep.subr.mxu0 0.0
  %902 = vmatpush1.msra.mxu0 0.0
  %903 = vmatprep.subr.mxu0 0.0
  %904 = vmatpush1.msra.mxu0 0.0
  %905 = vmatprep.subr.mxu0 0.0
  %906 = vmatpush1.msra.mxu0 0.0
  %907 = vmatprep.subr.mxu0 0.0
  %908 = vmatpush1.msra.mxu0 0.0
  %909 = vmatprep.subr.mxu0 0.0
  %910 = vmatpush1.msra.mxu0 0.0
  %911 = vmatprep.subr.mxu0 0.0
  %912 = vmatpush1.msra.mxu0 0.0
  %913 = vmatprep.subr.mxu0 0.0
  %914 = vmatpush1.msra.mxu0 0.0
  %915 = vmatprep.subr.mxu0 0.0
  %916 = vmatpush1.msra.mxu0 0.0
  %917 = vmatprep.subr.mxu0 0.0
  %918 = vmatpush1.msra.mxu0 0.0
  %919 = vmatprep.subr.mxu0 0.0
  %920 = vmatpush1.msra.mxu0 0.0
  %921 = vmatprep.subr.mxu0 0.0
  %922 = vmatpush1.msra.mxu0 0.0
  %923 = vmatprep.subr.mxu0 0.0
  %924 = vmatpush1.msra.mxu0 0.0
  %925 = vmatprep.subr.mxu0 0.0
  %926 = vmatpush1.msra.mxu0 0.0
  %927 = vmatprep.subr.mxu0 0.0
  %928 = vmatpush1.msra.mxu0 0.0
  %929 = vmatprep.subr.mxu0 0.0
  %930 = vmatpush1.msra.mxu0 0.0
  %931 = vmatprep.subr.mxu0 0.0
  %932 = vmatpush1.msra.mxu0 0.0
  %933 = vmatprep.subr.mxu0 0.0
  %934 = vmatpush1.msra.mxu0 0.0
  %935 = vmatprep.subr.mxu0 0.0
  %936 = vmatpush1.msra.mxu0 0.0
  %937 = vmatprep.subr.mxu0 0.0
  %938 = vmatpush1.msra.mxu0 0.0
  %939 = vmatprep.subr.mxu0 0.0
  %940 = vmatpush1.msra.mxu0 0.0
  %941 = vmatprep.subr.mxu0 0.0
  %942 = vmatpush1.msra.mxu0 0.0
  %943 = vmatprep.subr.mxu0 0.0
  %944 = vmatpush1.msra.mxu0 0.0
  %945 = vmatprep.subr.mxu0 0.0
  %946 = vmatpush1.msra.mxu0 0.0
  %947 = vmatprep.subr.mxu0 0.0
  %948 = vmatpush1.msra.mxu0 0.0
  %949 = vmatprep.mubr.f32.mxu0 0.0
  %950 = vmatmul.mubr.f32.gmra.mrb[0].mxu0 %v687
  %v951 = vpop.f32.mrb[0].mxu0
  %v952 = vadd.f32 0.0, %v951
  %v953 = vpop.f32.mrb[0].mxu0
  %954 = vmatprep.mubr.f32.mxu0 0.0
  %955 = vmatmul.mubr.f32.gmra.mrb[0].mxu0 %v690
  %v956 = vpop.f32.mrb[0].mxu0
  %v957 = vadd.f32 0.0, %v956
  %v958 = vpop.f32.mrb[0].mxu0
  %959 = vmatprep.mubr.f32.mxu0 0.0
  %960 = vmatmul.mubr.f32.gmra.mrb[0].mxu0 %v693
  %v961 = vpop.f32.mrb[0].mxu0
  %v962 = vadd.f32 0.0, %v961
  %v963 = vpop.f32.mrb[0].mxu0
  %964 = vmatprep.mubr.f32.mxu0 0.0
  %965 = vmatmul.mubr.f32.gmra.mrb[0].mxu0 %v696
  %v966 = vpop.f32.mrb[0].mxu0
  %v967 = vadd.f32 0.0, %v966
  %v968 = vpop.f32.mrb[0].mxu0
  %969 = vmatprep.mubr.f32.mxu0 0.0
  %970 = vmatmul.mubr.f32.gmra.mrb[0].mxu0 %v699
  %v971 = vpop.f32.mrb[0].mxu0
  %v972 = vadd.f32 0.0, %v971
  %v973 = vpop.f32.mrb[0].mxu0
  %974 = vmatprep.mubr.f32.mxu0 0.0
  %975 = vmatmul.mubr.f32.gmra.mrb[0].mxu0 %v702
  %v976 = vpop.f32.mrb[0].mxu0
  %v977 = vadd.f32 0.0, %v976
  %v978 = vpop.f32.mrb[0].mxu0
  %979 = vmatprep.mubr.f32.mxu0 0.0
  %980 = vmatmul.mubr.f32.gmra.mrb[0].mxu0 %v705
  %v981 = vpop.f32.mrb[0].mxu0
  %v982 = vadd.f32 0.0, %v981
  %v983 = vpop.f32.mrb[0].mxu0
  %984 = vmatprep.mubr.f32.mxu0 0.0
  %985 = vmatmul.mubr.f32.gmra.mrb[0].mxu0 %v708
  %v986 = vpop.f32.mrb[0].mxu0
  %v987 = vadd.f32 0.0, %v986
  %v988 = vpop.f32.mrb[0].mxu0
  %989 = vmatprep.mubr.f32.mxu0 0.0
  %990 = vmatmul.mubr.f32.gmra.mrb[0].mxu0 %v711
  %v991 = vpop.f32.mrb[0].mxu0
  %v992 = vadd.f32 0.0, %v991
  %v993 = vpop.f32.mrb[0].mxu0
  %994 = vmatprep.mubr.f32.mxu0 0.0
  %995 = vmatmul.mubr.f32.gmra.mrb[0].mxu0 %v714
  %v996 = vpop.f32.mrb[0].mxu0
  %v997 = vadd.f32 0.0, %v996
  %v998 = vpop.f32.mrb[0].mxu0
  %999 = vmatprep.mubr.f32.mxu0 0.0
  %1000 = vmatmul.mubr.f32.gmra.mrb[0].mxu0 %v717
  %v1001 = vpop.f32.mrb[0].mxu0
  %v1002 = vadd.f32 0.0, %v1001
  %v1003 = vpop.f32.mrb[0].mxu0
  %1004 = vmatprep.mubr.f32.mxu0 0.0
  %1005 = vmatmul.mubr.f32.gmra.mrb[0].mxu0 %v720
  %v1006 = vpop.f32.mrb[0].mxu0
  %v1007 = vadd.f32 0.0, %v1006
  %v1008 = vpop.f32.mrb[0].mxu0
  %1009 = vmatprep.mubr.f32.mxu0 0.0
  %1010 = vmatmul.mubr.f32.gmra.mrb[0].mxu0 %v723
  %v1011 = vpop.f32.mrb[0].mxu0
  %v1012 = vadd.f32 0.0, %v1011
  %v1013 = vpop.f32.mrb[0].mxu0
  %1014 = vmatprep.mubr.f32.mxu0 0.0
  %1015 = vmatmul.mubr.f32.gmra.mrb[0].mxu0 %v726
  %v1016 = vpop.f32.mrb[0].mxu0
  %v1017 = vadd.f32 0.0, %v1016
  %v1018 = vpop.f32.mrb[0].mxu0
  %1019 = vmatprep.mubr.f32.mxu0 0.0
  %1020 = vmatmul.mubr.f32.gmra.mrb[0].mxu0 %v729
  %v1021 = vpop.f32.mrb[0].mxu0
  %v1022 = vadd.f32 0.0, %v1021
  %v1023 = vpop.f32.mrb[0].mxu0
  %1024 = vmatprep.mubr.f32.mxu0 0.0
  %1025 = vmatmul.mubr.f32.gmra.mrb[0].mxu0 %v732
  %v1026 = vpop.f32.mrb[0].mxu0
  %v1027 = vadd.f32 0.0, %v1026
  %v1028 = vpop.f32.mrb[0].mxu0
  %1029 = vdwg.mxu0
  %1030 = vst.msk [vmem:[%s9] sm:$0xff] %vm59, %v576
  %1031 = vst.msk [vmem:[%s9 + $0x8] sm:$0xff] %vm59, %v581
  %1032 = vst.msk [vmem:[%s9 + $0x10] sm:$0xff] %vm59, %v586
  %1033 = vst.msk [vmem:[%s9 + $0x18] sm:$0xff] %vm59, %v591
  %1034 = vst.msk [vmem:[%s9 + $0x20] sm:$0xff] %vm59, %v596
  %1035 = vst.msk [vmem:[%s9 + $0x28] sm:$0xff] %vm59, %v601
  %1036 = vst.msk [vmem:[%s9 + $0x30] sm:$0xff] %vm59, %v606
  %1037 = vst.msk [vmem:[%s9 + $0x38] sm:$0xff] %vm59, %v611
  %1038 = vst.msk [vmem:[%s9 + $0x40] sm:$0xff] %vm59, %v616
  %1039 = vst.msk [vmem:[%s9 + $0x48] sm:$0xff] %vm59, %v621
  %1040 = vst.msk [vmem:[%s9 + $0x50] sm:$0xff] %vm59, %v626
  %1041 = vst.msk [vmem:[%s9 + $0x58] sm:$0xff] %vm59, %v631
  %1042 = vst.msk [vmem:[%s9 + $0x60] sm:$0xff] %vm59, %v636
  %1043 = vst.msk [vmem:[%s9 + $0x68] sm:$0xff] %vm59, %v641
  %1044 = vst.msk [vmem:[%s9 + $0x70] sm:$0xff] %vm59, %v646
  %1045 = vst.msk [vmem:[%s9 + $0x78] sm:$0xff] %vm59, %v651
  %1046 = vst.msk [vmem:[%s10] sm:$0xff] %vm342, %v804
  %1047 = vst.msk [vmem:[%s10 + $0x8] sm:$0xff] %vm342, %v809
  %1048 = vst.msk [vmem:[%s10 + $0x10] sm:$0xff] %vm342, %v814
  %1049 = vst.msk [vmem:[%s10 + $0x18] sm:$0xff] %vm342, %v819
  %1050 = vst.msk [vmem:[%s10 + $0x20] sm:$0xff] %vm342, %v824
  %1051 = vst.msk [vmem:[%s10 + $0x28] sm:$0xff] %vm342, %v829
  %1052 = vst.msk [vmem:[%s10 + $0x30] sm:$0xff] %vm342, %v834
  %1053 = vst.msk [vmem:[%s10 + $0x38] sm:$0xff] %vm342, %v839
  %1054 = vst.msk [vmem:[%s10 + $0x40] sm:$0xff] %vm342, %v844
  %1055 = vst.msk [vmem:[%s10 + $0x48] sm:$0xff] %vm342, %v849
  %1056 = vst.msk [vmem:[%s10 + $0x50] sm:$0xff] %vm342, %v854
  %1057 = vst.msk [vmem:[%s10 + $0x58] sm:$0xff] %vm342, %v859
  %1058 = vst.msk [vmem:[%s10 + $0x60] sm:$0xff] %vm342, %v864
  %1059 = vst.msk [vmem:[%s10 + $0x68] sm:$0xff] %vm342, %v869
  %1060 = vst.msk [vmem:[%s10 + $0x70] sm:$0xff] %vm342, %v874
  %1061 = vst.msk [vmem:[%s10 + $0x78] sm:$0xff] %vm342, %v879
  %1062 = vst.msk [vmem:[%s11] sm:$0xff] %vm342, %v952
  %1063 = vst.msk [vmem:[%s11 + $0x8] sm:$0xff] %vm342, %v957
  %1064 = vst.msk [vmem:[%s11 + $0x10] sm:$0xff] %vm342, %v962
  %1065 = vst.msk [vmem:[%s11 + $0x18] sm:$0xff] %vm342, %v967
  %1066 = vst.msk [vmem:[%s11 + $0x20] sm:$0xff] %vm342, %v972
  %1067 = vst.msk [vmem:[%s11 + $0x28] sm:$0xff] %vm342, %v977
  %1068 = vst.msk [vmem:[%s11 + $0x30] sm:$0xff] %vm342, %v982
  %1069 = vst.msk [vmem:[%s11 + $0x38] sm:$0xff] %vm342, %v987
  %1070 = vst.msk [vmem:[%s11 + $0x40] sm:$0xff] %vm342, %v992
  %1071 = vst.msk [vmem:[%s11 + $0x48] sm:$0xff] %vm342, %v997
  %1072 = vst.msk [vmem:[%s11 + $0x50] sm:$0xff] %vm342, %v1002
  %1073 = vst.msk [vmem:[%s11 + $0x58] sm:$0xff] %vm342, %v1007
  %1074 = vst.msk [vmem:[%s11 + $0x60] sm:$0xff] %vm342, %v1012
  %1075 = vst.msk [vmem:[%s11 + $0x68] sm:$0xff] %vm342, %v1017
  %1076 = vst.msk [vmem:[%s11 + $0x70] sm:$0xff] %vm342, %v1022
  %1077 = vst.msk [vmem:[%s11 + $0x78] sm:$0xff] %vm342, %v1027
  // Predicated region
  $region38: #{tpu_custom_call.1} parent=0 // pred_check
    _
  $region39: #{tpu_custom_call.1} parent=0 // pred_check_branch
    %1079 = sbr.rel (0) target = $region41
  $region40: #{tpu_custom_call.1} parent=0 // pred_region
    _
  $region41: #{tpu_custom_call.1} parent=0 // pred_fallthru
    _
  // Predicated region
  $region42: #{tpu_custom_call.1} parent=0 // pred_check
    _
  $region43: #{tpu_custom_call.1} parent=0 // pred_check_branch
    %1081 = sbr.rel (0) target = $region45
  $region44: #{tpu_custom_call.1} parent=0 // pred_region
    _
  $region45: #{tpu_custom_call.1} parent=0 // pred_fallthru
    _
  // Predicated region
  $region46: #{tpu_custom_call.1} parent=0 // pred_check
    _
  $region47: #{tpu_custom_call.1} parent=0 // pred_check_branch
    %1083 = sbr.rel (0) target = $region49
  $region48: #{tpu_custom_call.1} parent=0 // pred_region
    _
  $region49: #{tpu_custom_call.1} parent=0 // pred_fallthru
    _
  // Predicated region
  $region50: #{tpu_custom_call.1} parent=0 // pred_check
    _
  $region51: #{tpu_custom_call.1} parent=0 // pred_check_branch
    %1085 = sbr.rel (0) target = $region53
  $region52: #{tpu_custom_call.1} parent=0 // pred_region
    _
  $region53: #{tpu_custom_call.1} parent=0 // pred_fallthru
    _
  // Predicated region
  $region54: #{tpu_custom_call.1} parent=0 // pred_check
    _
  $region55: #{tpu_custom_call.1} parent=0 // pred_check_branch
    %1087 = sbr.rel (0) target = $region57
  $region56: #{tpu_custom_call.1} parent=0 // pred_region
    _
  $region57: #{tpu_custom_call.1} parent=0 // pred_fallthru
    _
  // Predicated region
  $region58: #{tpu_custom_call.1} parent=0 // pred_check
    _
  $region59: #{tpu_custom_call.1} parent=0 // pred_check_branch
    %1089 = sbr.rel (0) target = $region61
  $region60: #{tpu_custom_call.1} parent=0 // pred_region
    _
  $region61: #{tpu_custom_call.1} parent=0 // pred_fallthru
    _

</llo_original>
